<compile_context>
chip_gen: v6e
topology: v6e:2x2x1
jax: 0.10.0
libtpu: 0.0.40
codegen_flags: <defaults>
</compile_context>

<pallas_src>
import functools

import jax
import jax.numpy as jnp
from jax.experimental import pallas as pl
from jax.experimental.pallas import tpu as pltpu

EPS = 1e-5
_LANES = 128
_SUBLANES = 8
_NUM_CORES = 2  # v7x has 2 TensorCores; the extra axis is harmless on v5e/v6e.


def _dpl_nll_kernel(ys_ref, lab_ref, loss_ref, acc_ref, *,
                    inv_b, total, nclass, tile_rows):
    core = pl.program_id(0)
    step = pl.program_id(1)
    steps_per_core = pl.num_programs(1)

    @pl.when(step == 0)
    def _():
        acc_ref[...] = jnp.zeros_like(acc_ref)

    ys = ys_ref[...].astype(jnp.float32)   # (TR, 128) lane-dense probabilities
    lab = lab_ref[...]                     # (TR, 128) int32, label repeated per class

    # Flat element index into the [B*C] stream.  Computed from the *unclamped* block
    # id so OOB rows of a padded boundary block and clamped re-read blocks mask to 0.
    block = core * steps_per_core + step
    base = block * (tile_rows * _LANES)
    row = jax.lax.broadcasted_iota(jnp.int32, ys.shape, 0)
    col = jax.lax.broadcasted_iota(jnp.int32, ys.shape, 1)
    flat = base + row * _LANES + col
    cls = flat % nclass                    # class id carried by this lane
    mask = (lab == cls) & (flat < total)

    # -log(YS[b, LABELS[b]] + eps) on the selected lane, exact 0 elsewhere.  The select
    # happens *before* the log, so garbage-padded boundary lanes can never emit NaN.
    logv = jnp.log(jnp.where(mask, ys, 1.0) + EPS)
    contrib = jnp.where(mask, -logv, 0.0)  # (TR, 128)

    # Pure-VPU partial accumulate (leading-axis reshape-sum == adding TR/8 vregs).
    # The single cross-lane/sublane reduce is deferred to the finalize step.
    acc_ref[...] += contrib.reshape(
        tile_rows // _SUBLANES, _SUBLANES, _LANES).sum(axis=0)

    @pl.when(step == steps_per_core - 1)
    def _():
        loss_ref[...] = (jnp.sum(acc_ref[...]) * inv_b).reshape(1, 1, 1)


def mnmath_dpl_loss(ys, labels, nr_classes=2, tile_rows=1024):
    """Pallas implementation of the MNMATH_DPL forward (DPL NLL base loss).

    Args:
      ys: [B, nr_classes] float (f32 or bf16) probabilities (out_dict["YS"]).
      labels: [B] int ground-truth labels (out_dict["LABELS"]).
      nr_classes: number of classes.
      tile_rows: packed (128-lane) rows per grid step, multiple of 8.
        Default 1024 -> ~512 KiB per input buffer, 128*1024/C samples per step.

    Returns:
      (loss, losses) matching the PyTorch module's (loss, losses dict).
    """
    B, C = ys.shape
    assert C == nr_classes
    assert tile_rows % _SUBLANES == 0 and tile_rows >= _SUBLANES
    total = B * C

    # Lane-dense repack: [B, C] -> [n_rows, 128].  Metadata-only when B*C % 1024 == 0;
    # otherwise one small pad of the flat stream (never a tile_rows-aligned pad copy).
    align = _SUBLANES * _LANES  # 1024: keeps n_rows a multiple of 8
    padded = -(-total // align) * align
    ys_flat = ys.reshape(-1)
    lab_flat = jnp.repeat(labels.astype(jnp.int32), C)
    if padded != total:
        ys_flat = jnp.pad(ys_flat, (0, padded - total), constant_values=1)
        lab_flat = jnp.pad(lab_flat, (0, padded - total), constant_values=-1)
    n_rows = padded // _LANES
    ys_p = ys_flat.reshape(n_rows, _LANES)
    lab_p = lab_flat.reshape(n_rows, _LANES)

    tr = min(tile_rows, n_rows)
    n_steps = -(-n_rows // tr)                 # blocks that actually contain data
    steps_per_core = -(-n_steps // _NUM_CORES)
    last_block = n_steps - 1

    def data_map(c, i):
        # Clamp so the DMA never starts past the array; the kernel masks via the
        # recomputed *unclamped* flat index, so clamped re-reads contribute 0.
        return (jnp.minimum(c * steps_per_core + i, last_block), 0)

    kernel = functools.partial(
        _dpl_nll_kernel, inv_b=float(1.0 / B), total=total, nclass=C, tile_rows=tr)

    partials = pl.pallas_call(
        kernel,
        out_shape=jax.ShapeDtypeStruct((_NUM_CORES, 1, 1), jnp.float32),
        grid_spec=pltpu.PrefetchScalarGridSpec(
            num_scalar_prefetch=0,
            grid=(_NUM_CORES, steps_per_core),
            in_specs=[
                pl.BlockSpec((tr, _LANES), data_map),   # lane-dense YS
                pl.BlockSpec((tr, _LANES), data_map),   # lane-dense labels (int32)
            ],
            out_specs=pl.BlockSpec((1, 1, 1), lambda c, i: (c, 0, 0)),
            scratch_shapes=[pltpu.VMEM((_SUBLANES, _LANES), jnp.float32)],
        ),
        compiler_params=pltpu.CompilerParams(
            dimension_semantics=("parallel", "arbitrary")),
    )(ys_p, lab_p)

    # TODO(synk): `base_loss` is injected at construction in the PyTorch module; the
    # DPL NLL above is the concrete base loss used for this task.  The static 1/B
    # normalizer assumes all B labels are valid (matches the reference mean).
    loss = partials[0, 0, 0] + partials[1, 0, 0]
    losses = {"y-loss": loss}
    return loss, losses


if __name__ == "__main__":
    key = jax.random.PRNGKey(0)

    def make_case(k, b, c):
        k1, k2 = jax.random.split(k)
        logits = jax.random.normal(k1, (b, c), dtype=jnp.float32)
        ys = jax.nn.softmax(logits, axis=-1)
        labels = jax.random.randint(k2, (b,), 0, c, dtype=jnp.int32)
        ref = jnp.mean(-jnp.log(ys[jnp.arange(b), labels] + EPS))
        return ys, labels, ref

    k1, k2, k3 = jax.random.split(key, 3)

    # Small batch: flat-pad + in-kernel tail-mask path, one block per core.
    ys, labels, ref = make_case(k1, 20, 2)
    loss, _ = mnmath_dpl_loss(ys, labels, nr_classes=2)
    jax.block_until_ready(loss)
    assert jnp.allclose(loss, ref, atol=1e-5, rtol=1e-5), (loss, ref)

    # 1024-aligned batch: zero-copy lane-dense reshape path.
    ys, labels, ref = make_case(k2, 1024, 2)
    loss, _ = mnmath_dpl_loss(ys, labels, nr_classes=2)
    jax.block_until_ready(loss)
    assert jnp.allclose(loss, ref, atol=2e-4, rtol=2e-4), (loss, ref)

    # Multi-step accumulation per core + clamped trailing block + ragged tail mask.
    ys, labels, ref = make_case(k3, 1500, 2)
    loss, _ = mnmath_dpl_loss(ys, labels, nr_classes=2, tile_rows=8)
    jax.block_until_ready(loss)
    assert jnp.allclose(loss, ref, atol=2e-4, rtol=2e-4), (loss, ref)

    print("KERNEL_OK")
</pallas_src>

<mosaic_0001>
module attributes {stable_mosaic.version = 11 : i64} {
  func.func @_dpl_nll_kernel(%arg0: i32, %arg1: i32, %arg2: memref<8x128xf32, #tpu.memory_space<vmem>>, %arg3: memref<8x128xi32, #tpu.memory_space<vmem>>, %arg4: memref<1x1x1xf32, #tpu.memory_space<vmem>>, %arg5: memref<8x128xf32, #tpu.memory_space<vmem>>) attributes {dimension_semantics = [#tpu.dimension_semantics<parallel>, #tpu.dimension_semantics<arbitrary>], iteration_bounds = array<i64: 2, 1>, scalar_prefetch = 0 : i64, scratch_operands = 1 : i64, tpu.core_type = #tpu.core_type<tc>, window_params = [{transform_indices = @transform_0, window_bounds = array<i64: 8, 128>}, {transform_indices = @transform_1, window_bounds = array<i64: 8, 128>}, {transform_indices = @transform_2, window_bounds = array<i64: 1, 1, 1>}]} {
    %c0_i32 = arith.constant 0 : i32
    %0 = arith.cmpi eq, %arg1, %c0_i32 : i32
    %1 = arith.extui %0 : i1 to i32
    %c0_i32_0 = arith.constant 0 : i32
    %2 = arith.cmpi ne, %1, %c0_i32_0 : i32
    scf.if %2 {
      %cst_19 = arith.constant 0.000000e+00 : f32
      %52 = vector.broadcast %cst_19 : f32 to vector<8x128xf32>
      %c0_20 = arith.constant 0 : index
      %c0_21 = arith.constant 0 : index
      %53 = vector.load %arg5[%c0_20, %c0_21] : memref<8x128xf32, #tpu.memory_space<vmem>>, vector<8x128xf32>
      tpu.vector_store %arg5[%c0_20, %c0_21], %52 {strides = array<i32>} : memref<8x128xf32, #tpu.memory_space<vmem>>, vector<8x128xf32>,
    } else {
    }
    %c0 = arith.constant 0 : index
    %c0_1 = arith.constant 0 : index
    %3 = vector.load %arg2[%c0, %c0_1] : memref<8x128xf32, #tpu.memory_space<vmem>>, vector<8x128xf32>
    %c0_2 = arith.constant 0 : index
    %c0_3 = arith.constant 0 : index
    %4 = vector.load %arg3[%c0_2, %c0_3] : memref<8x128xi32, #tpu.memory_space<vmem>>, vector<8x128xi32>
    %c1_i32 = arith.constant 1 : i32
    %5 = arith.muli %arg0, %c1_i32 : i32
    %6 = arith.addi %5, %arg1 : i32
    %c1024_i32 = arith.constant 1024 : i32
    %7 = arith.muli %6, %c1024_i32 : i32
    %8 = tpu.iota {dimensions = array<i32: 0>} : vector<8x128xi32>
    %9 = tpu.iota {dimensions = array<i32: 1>} : vector<8x128xi32>
    %c128_i32 = arith.constant 128 : i32
    %10 = vector.broadcast %c128_i32 : i32 to vector<8x128xi32>
    %11 = arith.muli %8, %10 : vector<8x128xi32>
    %12 = vector.broadcast %7 : i32 to vector<8x128xi32>
    %13 = arith.addi %12, %11 : vector<8x128xi32>
    %14 = arith.addi %13, %9 : vector<8x128xi32>
    %c2_i32 = arith.constant 2 : i32
    %c0_i32_4 = arith.constant 0 : i32
    %15 = arith.cmpi eq, %c2_i32, %c0_i32_4 : i32
    %c1_i32_5 = arith.constant 1 : i32
    %16 = arith.select %15, %c1_i32_5, %c2_i32 : i32
    %17 = vector.broadcast %16 : i32 to vector<8x128xi32>
    %18 = arith.remsi %14, %17 : vector<8x128xi32>
    %c0_i32_6 = arith.constant 0 : i32
    %19 = vector.broadcast %c0_i32_6 : i32 to vector<8x128xi32>
    %20 = arith.cmpi ne, %18, %19 : vector<8x128xi32>
    %c0_i32_7 = arith.constant 0 : i32
    %21 = vector.broadcast %c0_i32_7 : i32 to vector<8x128xi32>
    %22 = arith.cmpi slt, %18, %21 : vector<8x128xi32>
    %c0_i32_8 = arith.constant 0 : i32
    %23 = arith.cmpi slt, %16, %c0_i32_8 : i32
    %24 = vector.broadcast %23 : i1 to vector<8x128xi1>
    %25 = vector.broadcast %24 : vector<8x128xi1> to vector<8x128xi1>
    %26 = arith.xori %22, %25 : vector<8x128xi1>
    %27 = arith.andi %26, %20 : vector<8x128xi1>
    %28 = vector.broadcast %16 : i32 to vector<8x128xi32>
    %29 = arith.addi %18, %28 : vector<8x128xi32>
    %30 = arith.select %27, %29, %18 : vector<8x128xi1>, vector<8x128xi32>
    %31 = arith.cmpi eq, %4, %30 : vector<8x128xi32>
    %c40_i32 = arith.constant 40 : i32
    %32 = vector.broadcast %c40_i32 : i32 to vector<8x128xi32>
    %33 = arith.cmpi slt, %14, %32 : vector<8x128xi32>
    %34 = arith.andi %31, %33 : vector<8x128xi1>
    %cst = arith.constant 1.000000e+00 : f32
    %35 = vector.broadcast %cst : f32 to vector<8x128xf32>
    %36 = arith.select %34, %3, %35 : vector<8x128xi1>, vector<8x128xf32>
    %cst_9 = arith.constant 9.99999974E-6 : f32
    %37 = vector.broadcast %cst_9 : f32 to vector<8x128xf32>
    %38 = arith.addf %36, %37 : vector<8x128xf32>
    %39 = math.log %38 : vector<8x128xf32>
    %cst_10 = arith.constant 0.000000e+00 : f32
    %40 = vector.broadcast %cst_10 : f32 to vector<8x128xf32>
    %41 = arith.subf %40, %39 : vector<8x128xf32>
    %cst_11 = arith.constant 0.000000e+00 : f32
    %42 = vector.broadcast %cst_11 : f32 to vector<8x128xf32>
    %43 = arith.select %34, %41, %42 : vector<8x128xi1>, vector<8x128xf32>
    %c0_12 = arith.constant 0 : index
    %c0_13 = arith.constant 0 : index
    %44 = vector.load %arg5[%c0_12, %c0_13] : memref<8x128xf32, #tpu.memory_space<vmem>>, vector<8x128xf32>
    %45 = vector.shape_cast %43 : vector<8x128xf32> to vector<1x8x128xf32>
    %cst_14 = arith.constant dense<0.000000e+00> : vector<8x128xf32>
    %46 = vector.multi_reduction <add>, %45, %cst_14 [0] : vector<1x8x128xf32> to vector<8x128xf32>
    %47 = arith.addf %44, %46 : vector<8x128xf32>
    %c0_15 = arith.constant 0 : index
    %c0_16 = arith.constant 0 : index
    %48 = vector.load %arg5[%c0_15, %c0_16] : memref<8x128xf32, #tpu.memory_space<vmem>>, vector<8x128xf32>
    tpu.vector_store %arg5[%c0_15, %c0_16], %47 {strides = array<i32>} : memref<8x128xf32, #tpu.memory_space<vmem>>, vector<8x128xf32>,
    %c0_i32_17 = arith.constant 0 : i32
    %49 = arith.cmpi eq, %arg1, %c0_i32_17 : i32
    %50 = arith.extui %49 : i1 to i32
    %c0_i32_18 = arith.constant 0 : i32
    %51 = arith.cmpi ne, %50, %c0_i32_18 : i32
    scf.if %51 {
      %c0_19 = arith.constant 0 : index
      %c0_20 = arith.constant 0 : index
      %52 = vector.load %arg5[%c0_19, %c0_20] : memref<8x128xf32, #tpu.memory_space<vmem>>, vector<8x128xf32>
      %53 = vector.shape_cast %52 : vector<8x128xf32> to vector<1x8x128xf32>
      %cst_21 = arith.constant dense<0.000000e+00> : vector<1xf32>
      %54 = vector.multi_reduction <add>, %53, %cst_21 [1, 2] : vector<1x8x128xf32> to vector<1xf32>
      %55 = vector.shape_cast %54 : vector<1xf32> to vector<1x1x1xf32>
      %56 = vector.extract %55[0, 0, 0] : f32 from vector<1x1x1xf32>
      %cst_22 = arith.constant 5.000000e-02 : f32
      %57 = arith.mulf %56, %cst_22 : f32
      %58 = vector.broadcast %57 : f32 to vector<1x1x1xf32>
      %c0_23 = arith.constant 0 : index
      %c0_24 = arith.constant 0 : index
      %c0_25 = arith.constant 0 : index
      %59 = vector.load %arg4[%c0_23, %c0_24, %c0_25] : memref<1x1x1xf32, #tpu.memory_space<vmem>>, vector<1x1x1xf32>
      tpu.vector_store %arg4[%c0_23, %c0_24, %c0_25], %58 {strides = array<i32>} : memref<1x1x1xf32, #tpu.memory_space<vmem>>, vector<1x1x1xf32>,
    } else {
    }
    return
  }
  func.func @transform_0(%arg0: i32, %arg1: i32) -> (i32, i32) {
    %c1_i32 = arith.constant 1 : i32
    %0 = arith.muli %arg0, %c1_i32 : i32
    %1 = arith.addi %0, %arg1 : i32
    %c0_i32 = arith.constant 0 : i32
    %2 = arith.minsi %1, %c0_i32 : i32
    %c0_i32_0 = arith.constant 0 : i32
    %c0_i32_1 = arith.constant 0 : i32
    return %2, %c0_i32_0 : i32, i32
  }
  func.func @transform_1(%arg0: i32, %arg1: i32) -> (i32, i32) {
    %c1_i32 = arith.constant 1 : i32
    %0 = arith.muli %arg0, %c1_i32 : i32
    %1 = arith.addi %0, %arg1 : i32
    %c0_i32 = arith.constant 0 : i32
    %2 = arith.minsi %1, %c0_i32 : i32
    %c0_i32_0 = arith.constant 0 : i32
    %c0_i32_1 = arith.constant 0 : i32
    return %2, %c0_i32_0 : i32, i32
  }
  func.func @transform_2(%arg0: i32, %arg1: i32) -> (i32, i32, i32) {
    %c0_i32 = arith.constant 0 : i32
    %c0_i32_0 = arith.constant 0 : i32
    %c0_i32_1 = arith.constant 0 : i32
    return %arg0, %c0_i32, %c0_i32_0 : i32, i32, i32
  }
}

</mosaic_0001>

<llo_original>
// kernel: tpu_custom_call.1
$region0: #{tpu_custom_call.1}
  #allocation0 [shape = 'u32[]', space=smem, size = 0x4, offset = 0x4, fixed_abs, tag = 'smem constant byte address 0x4 - core index']
  #allocation1 [shape = 'u32[144,128]{1,0:T(1,128)}', space=vmem, size = 0x12000, scoped, tag = 'internal scratch']
  #allocation2 [shape = 'f32[8,128]{1,0:T(8,128)}', space=vmem, size = 0x1000, scoped, tag = 'scratch operand']
  %s0 = inlined_call_operand.hbm [shape: f32[8,128], index: 0, kind: input, shape index: {}]
  %s1 = inlined_call_operand.hbm [shape: s32[8,128], index: 1, kind: input, shape index: {}]
  %s2 = inlined_call_operand.vmem [shape: f32[2,1,1], index: 2, kind: output, shape index: {}]
  %s3 = sld [smem:[#allocation0]]
  $region57: #{tpu_custom_call.1} parent=0
    _
  %s5 = ssub.s32 1, %s3
  %s6 = scalar_select 0, %s5, %s3
  $region1: #{tpu_custom_call.1} parent=0
    #allocation3 [shape = 'u8[8192]{0}', space=vmem, size = 0x2000, scoped, tag = 'input window, operand 0']
    #allocation4 [shape = 's32[2]{0}', space=sflag, size = 0x8, scoped, tag = 'scoped memory for tpu_custom_call.1']
    #allocation5 [shape = 'u8[8192]{0}', space=vmem, size = 0x2000, scoped, tag = 'input window, operand 1']
    #allocation6 [shape = 's32[2]{0}', space=sflag, size = 0x8, scoped, tag = 'scoped memory for tpu_custom_call.1']
    %7 = vsyncpa [#allocation4], 0
    %s8 = scalar_lea.sflag [#allocation4], 1
    %9 = vsyncpa %s8, 0
    %10 = vsyncpa [#allocation6], 0
    %s11 = scalar_lea.sflag [#allocation6], 1
    %12 = vsyncpa %s11, 0
    loop: start=0, step=1, limit=4
    $region2: #{tpu_custom_call.1} parent=1 // loop_pre_header
      _
    $region3: #{tpu_custom_call.1} parent=1 // loop_header
      %s14 = sphi 0, %s18
      %p15 = scmp.ge.s32.totalorder %s14, 4
      %s21 = sphi 0, %s33
      %s22 = sphi 0, %s29
      %s23 = sphi 0, %s21
      %s24 = sphi 0, %s22
      %s25 = sphi 0, %s23
      %s26 = sphi 0, %s24
      %s42 = sphi 0, %s44
      %s45 = sphi 0, %s42
      %s46 = sphi 0, %s45
      %s62 = sphi 0, %s46
      %s74 = sphi 0, %s76
      %s77 = sphi 0, %s74
      %s78 = sphi 0, %s77
      %s94 = sphi 0, %s78
      %s100 = sphi 0, %s102
      %s103 = sphi 0, %s100
      %s104 = sphi 0, %s103
      %s120 = sphi 0, %s104
    $region4: #{tpu_custom_call.1} parent=1 // loop_header_branch
      %17 = sbr.rel (%p15) target = $region8
    $region5: #{tpu_custom_call.1} parent=1 // loop_body
      %s19 = ssub.s32 %s14, 1
      %s20 = ssub.s32 %s14, 2
      %s27 = sadd.s32 1, %s22
      %p28 = scmp.ge.s32.totalorder %s27, 1
      %s29 = scalar_select %p28, 0, %s27
      %s30 = sadd.s32 1, %s21
      %s31 = scalar_select %p28, %s30, %s21
      %p32 = scmp.ge.s32.totalorder %s31, 2
      %s33 = scalar_select %p32, 0, %s31
      %s34 = sadd.s32 %s21, %s22
      %p35 = scmp.lt.s32.totalorder %s34, 0
      %s36 = scalar_select %p35, %s34, 0
      %s37 = sadd.s32 %s33, %s29
      %p38 = scmp.lt.s32.totalorder %s37, 0
      %s39 = scalar_select %p38, %s37, 0
      %s40 = ssub.s32 %s36, %s39
      %p41 = scmp.eq.s32.totalorder %s40, 0
      %s43 = sadd.s32 %s42, 1
      %s44 = scalar_select %p41, %s42, %s43
      %p47 = pneg %p41
      %p48 = scmp.eq.s32.totalorder %s14, 1
      %p49 = por %p47, %p48
      %p50 = scmp.ne.s32.totalorder %s42, %s45
      %p51 = scmp.eq.s32.totalorder %s14, 0
      %p52 = por %p50, %p51
      %p53 = scmp.ne.s32.totalorder %s42, %s45
      %p54 = scmp.eq.s32.totalorder %s19, 1
      %p55 = por %p53, %p54
      %p56 = scmp.ne.s32.totalorder %s45, %s46
      %p57 = scmp.eq.s32.totalorder %s19, 0
      %p58 = por %p56, %p57
      %p59 = scmp.ne.s32.totalorder %s45, %s46
      %p60 = scmp.eq.s32.totalorder %s20, 1
      %p61 = por %p59, %p60
      %p63 = scmp.ne.s32.totalorder %s46, %s62
      %p64 = scmp.eq.s32.totalorder %s20, 0
      %p65 = por %p63, %p64
      %s66 = sadd.s32 %s21, %s22
      %p67 = scmp.lt.s32.totalorder %s66, 0
      %s68 = scalar_select %p67, %s66, 0
      %s69 = sadd.s32 %s33, %s29
      %p70 = scmp.lt.s32.totalorder %s69, 0
      %s71 = scalar_select %p70, %s69, 0
      %s72 = ssub.s32 %s68, %s71
      %p73 = scmp.eq.s32.totalorder %s72, 0
      %s75 = sadd.s32 %s74, 1
      %s76 = scalar_select %p73, %s74, %s75
      %p79 = pneg %p73
      %p80 = scmp.eq.s32.totalorder %s14, 1
      %p81 = por %p79, %p80
      %p82 = scmp.ne.s32.totalorder %s74, %s77
      %p83 = scmp.eq.s32.totalorder %s14, 0
      %p84 = por %p82, %p83
      %p85 = scmp.ne.s32.totalorder %s74, %s77
      %p86 = scmp.eq.s32.totalorder %s19, 1
      %p87 = por %p85, %p86
      %p88 = scmp.ne.s32.totalorder %s77, %s78
      %p89 = scmp.eq.s32.totalorder %s19, 0
      %p90 = por %p88, %p89
      %p91 = scmp.ne.s32.totalorder %s77, %s78
      %p92 = scmp.eq.s32.totalorder %s20, 1
      %p93 = por %p91, %p92
      %p95 = scmp.ne.s32.totalorder %s78, %s94
      %p96 = scmp.eq.s32.totalorder %s20, 0
      %p97 = por %p95, %p96
      %s98 = ssub.s32 %s21, %s33
      %p99 = scmp.eq.s32.totalorder %s98, 0
      %s101 = sadd.s32 %s100, 1
      %s102 = scalar_select %p99, %s100, %s101
      %p105 = pneg %p99
      %p106 = scmp.eq.s32.totalorder %s14, 1
      %p107 = por %p105, %p106
      %p108 = scmp.ne.s32.totalorder %s100, %s103
      %p109 = scmp.eq.s32.totalorder %s14, 0
      %p110 = por %p108, %p109
      %p111 = scmp.ne.s32.totalorder %s100, %s103
      %p112 = scmp.eq.s32.totalorder %s19, 1
      %p113 = por %p111, %p112
      %p114 = scmp.ne.s32.totalorder %s103, %s104
      %p115 = scmp.eq.s32.totalorder %s19, 0
      %p116 = por %p114, %p115
      %p117 = scmp.ne.s32.totalorder %s103, %s104
      %p118 = scmp.eq.s32.totalorder %s20, 1
      %p119 = por %p117, %p118
      %p121 = scmp.ne.s32.totalorder %s104, %s120
      %p122 = scmp.eq.s32.totalorder %s20, 0
      %p123 = por %p121, %p122
      %p124 = scmp.le.s32.totalorder 1, %s14
      %p125 = scmp.lt.s32.totalorder %s14, 3
      %p126 = pnand %p124, %p125
      %p127 = pneg %p126
      // Predicated region
      $region9: #{tpu_custom_call.1} parent=5 // pred_check
        _
      $region10: #{tpu_custom_call.1} parent=5 // pred_check_branch
        %129 = sbr.rel (%p126) target = $region12
      $region11: #{tpu_custom_call.1} parent=5 // pred_region
        %s130 = ssub.s32 %s14, 1
      $region12: #{tpu_custom_call.1} parent=5 // pred_fallthru
        _
      %p131 = scmp.lt.s32.totalorder %s14, 2
      // Predicated region
      $region13: #{tpu_custom_call.1} parent=5 // pred_check
        %p132 = pneg %p131
      $region14: #{tpu_custom_call.1} parent=5 // pred_check_branch
        %134 = sbr.rel (%p132) target = $region16
      $region15: #{tpu_custom_call.1} parent=5 // pred_region
        // Predicated region
        $region17: #{tpu_custom_call.1} parent=15 // pred_check
          %p135 = pneg %p52
        $region18: #{tpu_custom_call.1} parent=15 // pred_check_branch
          %137 = sbr.rel (%p135) target = $region20
        $region19: #{tpu_custom_call.1} parent=15 // pred_region
          %s138 = sand.u32 %s42, 1
          %s139 = scalar_lea.sflag [#allocation4], %s138
          %s140 = sand.u32 %s42, 1
          %s141 = smul.addr %s140, 8
          %s142 = scalar_lea.vmem [#allocation3], %s141
          %s143 = sadd.s32 %s21, %s22
          %p144 = scmp.lt.s32.totalorder %s143, 0
          %s145 = scalar_select %p144, %s143, 0
          %s147 = ssub.s32 128, 128
          %148 = vsyncadd %s139, %s147
          %s149 = smul.addr %s145, 128
          %s150 = scalar_lea.hbm %s0, %s149
          %s152 = sshll.u32 %s142, 4
          %s153 = int_to_ptr.vmem [resolvable:$true] %s152
          %155 = dma.hbm_to_vmem [thread:$0]  %s150, 128, %s153, %s139
        $region20: #{tpu_custom_call.1} parent=15 // pred_fallthru
          _
        // Predicated region
        $region21: #{tpu_custom_call.1} parent=15 // pred_check
          %p156 = pneg %p84
        $region22: #{tpu_custom_call.1} parent=15 // pred_check_branch
          %158 = sbr.rel (%p156) target = $region24
        $region23: #{tpu_custom_call.1} parent=15 // pred_region
          %s159 = sand.u32 %s74, 1
          %s160 = scalar_lea.sflag [#allocation6], %s159
          %s161 = sand.u32 %s74, 1
          %s162 = smul.addr %s161, 8
          %s163 = scalar_lea.vmem [#allocation5], %s162
          %s164 = sadd.s32 %s21, %s22
          %p165 = scmp.lt.s32.totalorder %s164, 0
          %s166 = scalar_select %p165, %s164, 0
          %s168 = ssub.s32 128, 128
          %169 = vsyncadd %s160, %s168
          %s170 = smul.addr %s166, 128
          %s171 = scalar_lea.hbm %s1, %s170
          %s173 = sshll.u32 %s163, 4
          %s174 = int_to_ptr.vmem [resolvable:$true] %s173
          %176 = dma.hbm_to_vmem [thread:$0]  %s171, 128, %s174, %s160
        $region24: #{tpu_custom_call.1} parent=15 // pred_fallthru
          _
      $region16: #{tpu_custom_call.1} parent=5 // pred_fallthru
        _
      %p177 = scmp.le.s32.totalorder 1, %s14
      %p178 = scmp.lt.s32.totalorder %s14, 3
      %p179 = pnand %p177, %p178
      %p180 = pneg %p179
      // Predicated region
      $region25: #{tpu_custom_call.1} parent=5 // pred_check
        _
      $region26: #{tpu_custom_call.1} parent=5 // pred_check_branch
        %182 = sbr.rel (%p179) target = $region28
      $region27: #{tpu_custom_call.1} parent=5 // pred_region
        %s183 = ssub.s32 %s14, 1
        %s184 = sand.u32 %s45, 1
        %s185 = scalar_lea.sflag [#allocation4], %s184
        %s186 = sand.u32 %s45, 1
        %s187 = smul.addr %s186, 8
        %s188 = scalar_lea.vmem [#allocation3], %s187
        // Predicated region
        $region29: #{tpu_custom_call.1} parent=27 // pred_check
          %p189 = pneg %p58
        $region30: #{tpu_custom_call.1} parent=27 // pred_check_branch
          %191 = sbr.rel (%p189) target = $region32
        $region31: #{tpu_custom_call.1} parent=27 // pred_region
          %192 = dma.done %s185, 128
        $region32: #{tpu_custom_call.1} parent=27 // pred_fallthru
          _
        %s193 = sand.u32 %s77, 1
        %s194 = scalar_lea.sflag [#allocation6], %s193
        %s195 = sand.u32 %s77, 1
        %s196 = smul.addr %s195, 8
        %s197 = scalar_lea.vmem [#allocation5], %s196
        // Predicated region
        $region33: #{tpu_custom_call.1} parent=27 // pred_check
          %p198 = pneg %p90
        $region34: #{tpu_custom_call.1} parent=27 // pred_check_branch
          %200 = sbr.rel (%p198) target = $region36
        $region35: #{tpu_custom_call.1} parent=27 // pred_region
          %201 = dma.done %s194, 128
        $region36: #{tpu_custom_call.1} parent=27 // pred_fallthru
          _
        %s202 = sand.u32 %s45, 1
        %s203 = scalar_lea.sflag [#allocation4], %s202
        %s204 = sand.u32 %s45, 1
        %s205 = smul.addr %s204, 8
        %s206 = scalar_lea.vmem [#allocation3], %s205
        %p207 = pneg %p58
        %p208 = pneg %p55
        %s209 = sand.u32 %s77, 1
        %s210 = scalar_lea.sflag [#allocation6], %s209
        %s211 = sand.u32 %s77, 1
        %s212 = smul.addr %s211, 8
        %s213 = scalar_lea.vmem [#allocation5], %s212
        %p214 = pneg %p90
        %p215 = pneg %p87
        %p216 = pneg %p116
        %p217 = pneg %p113
        %p218 = scmp.lt.s32.totalorder %s23, 1
        %s219 = scalar_select %p218, %s23, 1
        %s220 = scalar_lea.vmem %s2, %s219
        %s221 = sadd.s32 %s23, %s24
        %p222 = scmp.lt.s32.totalorder %s221, 0
        %s223 = scalar_select %p222, %s221, 0
        %s224 = sadd.s32 %s23, %s24
        %p225 = scmp.lt.s32.totalorder %s224, 0
        %s226 = scalar_select %p225, %s224, 0
        %p227 = scmp.lt.s32.totalorder %s23, 1
        %s228 = scalar_select %p227, %s23, 1
        %s229 = scalar_lea.vmem %s2, %s228
        %p230 = scmp.eq.s32.totalorder %s24, 0
        // Predicated region
        $region37: #{tpu_custom_call.1} parent=27 // pred_check
          %p231 = pneg %p230
        $region38: #{tpu_custom_call.1} parent=27 // pred_check_branch
          %233 = sbr.rel (%p231) target = $region40
        $region39: #{tpu_custom_call.1} parent=27 // pred_region
          %234 = vst [vmem:[#allocation2] sm:$0xff] 0.0
        $region40: #{tpu_custom_call.1} parent=27 // pred_fallthru
          _
        %v235 = vld [vmem:[%s188] sm:$0xff]
        %v236 = vld [vmem:[%s197] sm:$0xff]
        %s237 = sadd.s32 %s23, %s24
        %s238 = smul.u32 %s237, 1024
        %v239 = vlaneseq
        %v240 = vshrl.u32 %v239, 7
        %v241 = vlaneseq
        %v242 = vand.u32 %v241, 127
        %v243 = vmul.u32 %v240, 128
        %v244 = vstv %s238
        %v245 = vadd.s32 %v244, %v243
        %v246 = vadd.s32 %v245, %v242
        %vm247 = vcmp.lt.s32.totalorder %v246, 0
        %v248 = vsub.s32 0, %v246
        %v249 = vsel %vm247, %v248, %v246
        %v250 = vshrl.u32 %v249, 1
        %v251 = vand.u32 %v249, 1
        %v252 = vsub.s32 0, %v251
        %v253 = vsel %vm247, %v252, %v251
        %vm254 = vcmp.ne.s32.totalorder %v253, 0
        %vm255 = vcmp.lt.s32.totalorder %v253, 0
        %vm256 = vmand %vm255, %vm254
        %v257 = vadd.s32 %v253, 2
        %v258 = vsel %vm256, %v257, %v253
        %vm259 = vcmp.eq.s32.totalorder %v236, %v258
        %vm260 = vcmp.lt.s32.totalorder %v246, 40
        %vm261 = vmand %vm259, %vm260
        %v262 = vsel %vm261, %v235, 1.0
        %v263 = vadd.f32 %v262, 1e-05
        %v264 = vlog2.pop %v263
        %v265 = vmul.f32 %v264, 0.6931472
        %v266 = vsub.f32 0.0, %v265
        %v267 = vsel %vm261, %v266, 0.0
        %v268 = vld [vmem:[#allocation2] sm:$0xff]
        %v269 = vadd.f32 %v267, 0.0
        %v270 = vadd.f32 %v268, %v269
        %271 = vst [vmem:[#allocation2] sm:$0xff] %v270
        // Predicated region
        $region41: #{tpu_custom_call.1} parent=27 // pred_check
          %p272 = pneg %p230
        $region42: #{tpu_custom_call.1} parent=27 // pred_check_branch
          %274 = sbr.rel (%p272) target = $region44
        $region43: #{tpu_custom_call.1} parent=27 // pred_region
          %v275 = vld [vmem:[#allocation2] sm:$0xff]
          %276 = vadd.xlane.f32.xlu0 %v275
          %v277 = vpop.xlane.xlu0 %276
          %v278 = vrot.slane %v277, 4
          %v279 = vadd.f32 %v277, %v278
          %v280 = vrot.slane %v279, 2
          %v281 = vadd.f32 %v279, %v280
          %v282 = vrot.slane %v281, 1
          %v283 = vadd.f32 %v281, %v282
          %s284 = vtos %v283
          %s285 = smul.f32 %s284, 0.05
          %v286 = vstv %s285
          %vm287 = vcmask 0
          %288 = vst.msk [vmem:[%s229] sm:$0x1] %vm287, %v286
        $region44: #{tpu_custom_call.1} parent=27 // pred_fallthru
          _
        %p289 = scmp.lt.s32.totalorder %s23, 1
        %s290 = scalar_select %p289, %s23, 1
        %s291 = scalar_lea.vmem %s2, %s290
        // Predicated region
        $region45: #{tpu_custom_call.1} parent=27 // pred_check
          %p292 = pneg %p113
        $region46: #{tpu_custom_call.1} parent=27 // pred_check_branch
          %294 = sbr.rel (%p292) target = $region48
        $region47: #{tpu_custom_call.1} parent=27 // pred_region
          _
        $region48: #{tpu_custom_call.1} parent=27 // pred_fallthru
          _
      $region28: #{tpu_custom_call.1} parent=5 // pred_fallthru
        _
      %p295 = scmp.le.s32.totalorder 2, %s14
      // Predicated region
      $region49: #{tpu_custom_call.1} parent=5 // pred_check
        %p296 = pneg %p295
      $region50: #{tpu_custom_call.1} parent=5 // pred_check_branch
        %298 = sbr.rel (%p296) target = $region52
      $region51: #{tpu_custom_call.1} parent=5 // pred_region
        %s299 = ssub.s32 %s14, 2
        // Predicated region
        $region53: #{tpu_custom_call.1} parent=51 // pred_check
          %p300 = pneg %p119
        $region54: #{tpu_custom_call.1} parent=51 // pred_check_branch
          %302 = sbr.rel (%p300) target = $region56
        $region55: #{tpu_custom_call.1} parent=51 // pred_region
          %p303 = scmp.lt.s32.totalorder %s25, 1
          %s304 = scalar_select %p303, %s25, 1
          %s305 = scalar_lea.vmem %s2, %s304
        $region56: #{tpu_custom_call.1} parent=51 // pred_fallthru
          _
      $region52: #{tpu_custom_call.1} parent=5 // pred_fallthru
        _
    $region6: #{tpu_custom_call.1} parent=1 // loop_footer
      %s18 = sadd.s32 1, %s14
    $region7: #{tpu_custom_call.1} parent=1 // loop_footer_branch
      %13 = sbr.rel target = $region3
    $region8: #{tpu_custom_call.1} parent=1 // loop_exit
      _
    %306 = vsyncpa [#allocation4], 1
    %s307 = scalar_lea.sflag [#allocation4], 1
    %308 = vsyncpa %s307, 1
    %309 = vsyncpa [#allocation6], 1
    %s310 = scalar_lea.sflag [#allocation6], 1
    %311 = vsyncpa %s310, 1

</llo_original>
